<compile_context>
chip_gen: v5e
topology: v5e:2x2
jax: 0.10.0
libtpu: 0.0.40
codegen_flags: <defaults>
</compile_context>

<pallas_src>
import jax
import jax.numpy as jnp
from jax.experimental import pallas as pl
from jax.experimental.pallas import tpu as pltpu


# ----------------------------------------------------------------------------
# Pallas kernel: one row-tile of  y_f = x_f @ KT_blk   (runs on the MXU)
#   x_f : [TZF, FOLD*C_in]   (FOLD consecutive rows folded into the lane axis)
#   KT  : [FOLD*C_in, FOLD*C_out] = kron(I_FOLD, K^T), VMEM-resident across grid
#   y_f : [TZF, FOLD*C_out]
# ----------------------------------------------------------------------------
def _self_interaction_kernel(x_ref, kt_ref, o_ref):
    o_ref[...] = jnp.dot(
        x_ref[...], kt_ref[...], preferred_element_type=jnp.float32
    ).astype(o_ref.dtype)


def _fold_factor(c_in):
    """Rows folded into lanes so fold*C_in == 128 (lane-dense)."""
    if 0 < c_in <= 128 and 128 % c_in == 0:
        return 128 // c_in
    return 1  # fallback: no fold (masked lanes, still correct)


def build_folded_weight(K, fold, dtype=jnp.bfloat16):
    """kron(I_fold, K^T) -> [fold*C_in, fold*C_out]. Precompute once per K."""
    kt = K.T.astype(dtype)
    if fold == 1:
        return kt
    return jnp.kron(jnp.eye(fold, dtype=dtype), kt)


def self_interaction_pallas(
    features,
    K,
    *,
    kt_blk=None,
    io_dtype=jnp.bfloat16,
    tile_rows_folded=2048,
    min_pallas_rows=4096,
):
    """features: [..., C_in], K: [C_out, C_in] -> [..., C_out] (io_dtype).

    kt_blk           : optional precomputed build_folded_weight(K, fold, io_dtype)
    io_dtype         : HBM-facing dtype (bf16 default); MXU accumulates in f32
    tile_rows_folded : folded rows per grid step (multiple of 8)
    min_pallas_rows  : below this many real rows, use a plain XLA dot instead
    """
    *size, c_in = features.shape
    c_out = K.shape[0]
    x = features.reshape(-1, c_in)
    z = x.shape[0]

    # ---- small-Z fallback: launch/padding overhead would dominate ----------
    if z < min_pallas_rows:
        y = jnp.dot(
            x.astype(io_dtype),
            K.T.astype(io_dtype),
            preferred_element_type=jnp.float32,
        ).astype(io_dtype)
        return y.reshape(*size, c_out)

    # ---- lane-dense fold ----------------------------------------------------
    fold = _fold_factor(c_in)
    if kt_blk is None:
        kt_blk = build_folded_weight(K, fold, io_dtype)
    else:
        kt_blk = kt_blk.astype(io_dtype)

    x = x.astype(io_dtype)

    # Pad rows only to a multiple of 8*fold (<= 8*fold-1 rows); zero-copy when
    # already aligned.  Ragged last tiles across the grid are masked by Pallas.
    granule = 8 * fold
    z_pad = ((z + granule - 1) // granule) * granule
    if z_pad != z:
        x = jnp.pad(x, ((0, z_pad - z), (0, 0)))
    zf = z_pad // fold                       # folded rows (multiple of 8)
    x_f = x.reshape(zf, fold * c_in)

    tzf = min(int(tile_rows_folded) // 8 * 8, zf)
    tzf = max(tzf, 8)
    grid = (pl.cdiv(zf, tzf),)

    itemsize = jnp.dtype(io_dtype).itemsize
    cost = pl.CostEstimate(
        flops=2 * z * c_in * c_out,          # useful flops (unfolded)
        transcendentals=0,
        bytes_accessed=itemsize
        * (z_pad * c_in + z_pad * c_out + fold * c_in * fold * c_out),
    )

    out_f = pl.pallas_call(
        _self_interaction_kernel,
        out_shape=jax.ShapeDtypeStruct((zf, fold * c_out), io_dtype),
        grid=grid,
        in_specs=[
            # row tiles of x, pipelined / double-buffered
            pl.BlockSpec((tzf, fold * c_in), lambda i: (i, 0)),
            # kron(I_fold, K^T): same block every step -> DMA'd once, resident
            pl.BlockSpec((fold * c_in, fold * c_out), lambda i: (0, 0)),
        ],
        out_specs=pl.BlockSpec((tzf, fold * c_out), lambda i: (i, 0)),
        compiler_params=pltpu.CompilerParams(
            dimension_semantics=("parallel",),   # rows shard across TCs on v7x
        ),
        cost_estimate=cost,
    )(x_f, kt_blk)

    y = out_f.reshape(z_pad, c_out)
    if z_pad != z:
        y = y[:z]
    return y.reshape(*size, c_out)


def make_self_interaction(K, *, io_dtype=jnp.bfloat16, tile_rows_folded=2048,
                          min_pallas_rows=4096):
    """Hoist the folded weight out of the per-call wrapper (build once per K)."""
    c_in = K.shape[1]
    fold = _fold_factor(c_in)
    kt_blk = build_folded_weight(K, fold, io_dtype)

    def apply(features):
        return self_interaction_pallas(
            features, K, kt_blk=kt_blk, io_dtype=io_dtype,
            tile_rows_folded=tile_rows_folded, min_pallas_rows=min_pallas_rows)

    return apply


# ----------------------------------------------------------------------------
# Parameter construction (glue, plain JAX) — deterministic.
# Rs = list of (multiplicity, L).  Kernel with ConstantRadialModel at r=0
# reduces to block-diagonal mixing of multiplicities within each L.
# ----------------------------------------------------------------------------
def rs_dim(Rs):
    return sum(mul * (2 * l + 1) for mul, l in Rs)


def build_self_interaction_matrix(key, Rs_in, Rs_out, dtype=jnp.float32):
    dim_in = rs_dim(Rs_in)
    dim_out = rs_dim(Rs_out)
    K = jnp.zeros((dim_out, dim_in), dtype=dtype)

    row = 0
    for mul_out, l_out in Rs_out:
        d_out = 2 * l_out + 1
        col = 0
        for mul_in, l_in in Rs_in:
            d_in = 2 * l_in + 1
            if l_in == l_out:
                key, sub = jax.random.split(key)
                W = jax.random.normal(sub, (mul_out, mul_in), dtype=dtype)
                W = W / jnp.sqrt(jnp.asarray(mul_in, dtype))
                block = jnp.kron(W, jnp.eye(d_out, dtype=dtype))
                K = K.at[row:row + mul_out * d_out,
                         col:col + mul_in * d_in].set(block)
            col += mul_in * d_in
        row += mul_out * d_out
    return K


# ----------------------------------------------------------------------------
if __name__ == "__main__":
    # Rs_in: 4 scalars (L=0) + 4 vectors (L=1)  -> C_in  = 4*1 + 4*3 = 16
    # Rs_out: 8 scalars (L=0) + 8 vectors (L=1) -> C_out = 8*1 + 8*3 = 32
    Rs_in = [(4, 0), (4, 1)]
    Rs_out = [(8, 0), (8, 1)]

    key = jax.random.PRNGKey(0)
    k_w, k_x = jax.random.split(key)

    K = build_self_interaction_matrix(k_w, Rs_in, Rs_out)

    # features: [batch=2, points=8, C_in=16]  (channels-last, like e3nn)
    features = jax.random.normal(k_x, (2, 8, rs_dim(Rs_in)), dtype=jnp.float32)

    # Reference: einsum('zij,zj->zi') with k constant over z == x @ K.T
    ref = jnp.einsum("ij,...j->...i", K, features)

    # f32 I/O path: bit-accurate parity with the reference (forces the Pallas
    # path with min_pallas_rows=0 so the demo actually exercises the kernel).
    out_f32 = self_interaction_pallas(
        features, K, io_dtype=jnp.float32, min_pallas_rows=0)
    out_f32 = jax.block_until_ready(out_f32)
    assert out_f32.shape == (2, 8, rs_dim(Rs_out))
    assert jnp.allclose(out_f32, ref, atol=1e-5, rtol=1e-5)

    # bf16 I/O path (default / recommended): halves HBM traffic, f32 accumulate.
    apply_si = make_self_interaction(K, min_pallas_rows=0)
    out_bf16 = jax.block_until_ready(apply_si(features))
    assert out_bf16.shape == (2, 8, rs_dim(Rs_out))
    assert out_bf16.dtype == jnp.bfloat16
    assert jnp.allclose(out_bf16.astype(jnp.float32), ref, atol=5e-2, rtol=5e-2)

    print("KERNEL_OK")
</pallas_src>

<mosaic_0001>
module attributes {stable_mosaic.version = 11 : i64} {
  func.func @_self_interaction_kernel(%arg0: i32, %arg1: memref<8x128xf32, #tpu.memory_space<vmem>>, %arg2: memref<128x256xf32, #tpu.memory_space<vmem>>, %arg3: memref<8x256xf32, #tpu.memory_space<vmem>>) attributes {dimension_semantics = [#tpu.dimension_semantics<parallel>], iteration_bounds = array<i64: 1>, scalar_prefetch = 0 : i64, scratch_operands = 0 : i64, tpu.core_type = #tpu.core_type<tc>, window_params = [{transform_indices = @transform_0, window_bounds = array<i64: 8, 128>}, {pipeline_mode = #tpu.pipeline_mode<synchronous>, transform_indices = @transform_1, window_bounds = array<i64: 128, 256>}, {transform_indices = @transform_2, window_bounds = array<i64: 8, 256>}]} {
    %c0 = arith.constant 0 : index
    %c0_0 = arith.constant 0 : index
    %0 = vector.load %arg1[%c0, %c0_0] : memref<8x128xf32, #tpu.memory_space<vmem>>, vector<8x128xf32>
    %c0_1 = arith.constant 0 : index
    %c0_2 = arith.constant 0 : index
    %1 = vector.load %arg2[%c0_1, %c0_2] : memref<128x256xf32, #tpu.memory_space<vmem>>, vector<128x256xf32>
    %cst = arith.constant dense<0.000000e+00> : vector<8x256xf32>
    %2 = tpu.matmul %0, %1, %cst {dimension_numbers = #tpu.dot_dimension_numbers<[1], [0], [0], [1], [0, 0, 1, 1], [], []>} : vector<8x128xf32>, vector<128x256xf32>, vector<8x256xf32> -> vector<8x256xf32>
    %c0_3 = arith.constant 0 : index
    %c0_4 = arith.constant 0 : index
    %3 = vector.load %arg3[%c0_3, %c0_4] : memref<8x256xf32, #tpu.memory_space<vmem>>, vector<8x256xf32>
    tpu.vector_store %arg3[%c0_3, %c0_4], %2 {strides = array<i32>} : memref<8x256xf32, #tpu.memory_space<vmem>>, vector<8x256xf32>,
    return
  }
  func.func @transform_0(%arg0: i32) -> (i32, i32) {
    %c0_i32 = arith.constant 0 : i32
    %c0_i32_0 = arith.constant 0 : i32
    return %arg0, %c0_i32 : i32, i32
  }
  func.func @transform_1(%arg0: i32) -> (i32, i32) {
    %c0_i32 = arith.constant 0 : i32
    %c0_i32_0 = arith.constant 0 : i32
    %c0_i32_1 = arith.constant 0 : i32
    return %c0_i32, %c0_i32_0 : i32, i32
  }
  func.func @transform_2(%arg0: i32) -> (i32, i32) {
    %c0_i32 = arith.constant 0 : i32
    %c0_i32_0 = arith.constant 0 : i32
    return %arg0, %c0_i32 : i32, i32
  }
}

</mosaic_0001>

<llo_original>
// kernel: tpu_custom_call.1
$region0: #{tpu_custom_call.1}
  #allocation0 [shape = 'u32[]', space=smem, size = 0x4, offset = 0x4, fixed_abs, tag = 'smem constant byte address 0x4 - core index']
  #allocation1 [shape = 'u32[72,128]{1,0:T(1,128)}', space=vmem, size = 0x9000, scoped, tag = 'internal scratch']
  %s0 = inlined_call_operand.hbm [shape: f32[8,128], index: 0, kind: input, shape index: {}]
  %s1 = inlined_call_operand.hbm [shape: f32[128,256], index: 1, kind: input, shape index: {}]
  %s2 = inlined_call_operand.hbm [shape: f32[8,256], index: 2, kind: output, shape index: {}]
  %s3 = sld [smem:[#allocation0]]
  $region26: #{tpu_custom_call.1} parent=0
    _
  %s5 = ssub.s32 1, %s3
  %s6 = scalar_select 0, %s5, %s3
  $region1: #{tpu_custom_call.1} parent=0
    #allocation2 [shape = 'u8[4096]{0}', space=vmem, size = 0x1000, scoped, tag = 'input window, operand 0, single buffered']
    #allocation3 [shape = 's32[1]{0}', space=sflag, size = 0x4, scoped, tag = 'scoped memory for tpu_custom_call.1']
    #allocation4 [shape = 's32[1]{0}', space=sflag, size = 0x4, scoped, tag = 'scoped memory for tpu_custom_call.1']
    #allocation5 [shape = 'u8[131072]{0}', space=vmem, size = 0x20000, scoped, tag = 'input window, operand 1, single buffered']
    #allocation6 [shape = 's32[1]{0}', space=sflag, size = 0x4, scoped, tag = 'scoped memory for tpu_custom_call.1']
    #allocation7 [shape = 'u8[8192]{0}', space=vmem, size = 0x2000, scoped, tag = 'output window, operand 0, single buffered']
    %7 = vsyncpa [#allocation3], 0
    %8 = vsyncpa [#allocation6], 0
    %9 = vsyncpa [#allocation4], 0
    // Predicated region
    $region2: #{tpu_custom_call.1} parent=1 // pred_check
      _
    $region3: #{tpu_custom_call.1} parent=1 // pred_check_branch
      %11 = sbr.rel (0) target = $region5
    $region4: #{tpu_custom_call.1} parent=1 // pred_region
      %13 = vsyncadd [#allocation3], 0
      %s15 = sshll.u32 %s0, 4
      %s16 = int_to_ptr.hbm [resolvable:$true] %s15
      %s17 = sshll.u32 [#allocation2], 4
      %s18 = int_to_ptr.vmem [resolvable:$true] %s17
      %20 = dma.hbm_to_vmem [thread:$0]  %s16, 128, %s18, [#allocation3]
    $region5: #{tpu_custom_call.1} parent=1 // pred_fallthru
      _
    // Predicated region
    $region6: #{tpu_custom_call.1} parent=1 // pred_check
      _
    $region7: #{tpu_custom_call.1} parent=1 // pred_check_branch
      %22 = sbr.rel (0) target = $region9
    $region8: #{tpu_custom_call.1} parent=1 // pred_region
      %24 = vsyncadd [#allocation6], 0
      %s25 = sshll.u32 %s1, 4
      %s26 = int_to_ptr.hbm [resolvable:$true] %s25
      %s27 = sshll.u32 [#allocation5], 4
      %s28 = int_to_ptr.vmem [resolvable:$true] %s27
      %33 = dma.hbm_to_vmem [thread:$0]  %s26, 4096, %s28, [#allocation6], 256, 256, 16
    $region9: #{tpu_custom_call.1} parent=1 // pred_fallthru
      _
    // Predicated region
    $region10: #{tpu_custom_call.1} parent=1 // pred_check
      _
    $region11: #{tpu_custom_call.1} parent=1 // pred_check_branch
      %35 = sbr.rel (0) target = $region13
    $region12: #{tpu_custom_call.1} parent=1 // pred_region
      %37 = dma.done [#allocation3], 128
    $region13: #{tpu_custom_call.1} parent=1 // pred_fallthru
      _
    // Predicated region
    $region14: #{tpu_custom_call.1} parent=1 // pred_check
      _
    $region15: #{tpu_custom_call.1} parent=1 // pred_check_branch
      %39 = sbr.rel (0) target = $region17
    $region16: #{tpu_custom_call.1} parent=1 // pred_region
      %41 = dma.done [#allocation6], 4096
    $region17: #{tpu_custom_call.1} parent=1 // pred_fallthru
      _
    %v42 = vld [vmem:[#allocation2] sm:$0xff]
    %v43 = vld [vmem:[#allocation5] sm:$0xff]
    %v44 = vld [vmem:[#allocation5 + $0x8] sm:$0xff]
    %v45 = vld [vmem:[#allocation5 + $0x10] sm:$0xff]
    %v46 = vld [vmem:[#allocation5 + $0x18] sm:$0xff]
    %v47 = vld [vmem:[#allocation5 + $0x20] sm:$0xff]
    %v48 = vld [vmem:[#allocation5 + $0x28] sm:$0xff]
    %v49 = vld [vmem:[#allocation5 + $0x30] sm:$0xff]
    %v50 = vld [vmem:[#allocation5 + $0x38] sm:$0xff]
    %v51 = vld [vmem:[#allocation5 + $0x40] sm:$0xff]
    %v52 = vld [vmem:[#allocation5 + $0x48] sm:$0xff]
    %v53 = vld [vmem:[#allocation5 + $0x50] sm:$0xff]
    %v54 = vld [vmem:[#allocation5 + $0x58] sm:$0xff]
    %v55 = vld [vmem:[#allocation5 + $0x60] sm:$0xff]
    %v56 = vld [vmem:[#allocation5 + $0x68] sm:$0xff]
    %v57 = vld [vmem:[#allocation5 + $0x70] sm:$0xff]
    %v58 = vld [vmem:[#allocation5 + $0x78] sm:$0xff]
    %v59 = vld [vmem:[#allocation5 + $0x80] sm:$0xff]
    %v60 = vld [vmem:[#allocation5 + $0x88] sm:$0xff]
    %v61 = vld [vmem:[#allocation5 + $0x90] sm:$0xff]
    %v62 = vld [vmem:[#allocation5 + $0x98] sm:$0xff]
    %v63 = vld [vmem:[#allocation5 + $0xa0] sm:$0xff]
    %v64 = vld [vmem:[#allocation5 + $0xa8] sm:$0xff]
    %v65 = vld [vmem:[#allocation5 + $0xb0] sm:$0xff]
    %v66 = vld [vmem:[#allocation5 + $0xb8] sm:$0xff]
    %v67 = vld [vmem:[#allocation5 + $0xc0] sm:$0xff]
    %v68 = vld [vmem:[#allocation5 + $0xc8] sm:$0xff]
    %v69 = vld [vmem:[#allocation5 + $0xd0] sm:$0xff]
    %v70 = vld [vmem:[#allocation5 + $0xd8] sm:$0xff]
    %v71 = vld [vmem:[#allocation5 + $0xe0] sm:$0xff]
    %v72 = vld [vmem:[#allocation5 + $0xe8] sm:$0xff]
    %v73 = vld [vmem:[#allocation5 + $0xf0] sm:$0xff]
    %v74 = vld [vmem:[#allocation5 + $0xf8] sm:$0xff]
    %75 = vmatpush.msra.mxu0 %v73
    %76 = vmatpush.msra.mxu0 %v71
    %77 = vmatpush.msra.mxu0 %v69
    %78 = vmatpush.msra.mxu0 %v67
    %79 = vmatpush.msra.mxu0 %v65
    %80 = vmatpush.msra.mxu0 %v63
    %81 = vmatpush.msra.mxu0 %v61
    %82 = vmatpush.msra.mxu0 %v59
    %83 = vmatpush.msra.mxu0 %v57
    %84 = vmatpush.msra.mxu0 %v55
    %85 = vmatpush.msra.mxu0 %v53
    %86 = vmatpush.msra.mxu0 %v51
    %87 = vmatpush.msra.mxu0 %v49
    %88 = vmatpush.msra.mxu0 %v47
    %89 = vmatpush.msra.mxu0 %v45
    %90 = vmatpush.msra.mxu0 %v43
    %91 = vmatmul.f32.gmra.mxu0 %v42
    %v92 = vpop.f32.mrf.mxu0
    %v93 = vadd.f32 0.0, %v92
    %94 = vdwg.mxu0
    %95 = vmatpush.msra.mxu0 %v74
    %96 = vmatpush.msra.mxu0 %v72
    %97 = vmatpush.msra.mxu0 %v70
    %98 = vmatpush.msra.mxu0 %v68
    %99 = vmatpush.msra.mxu0 %v66
    %100 = vmatpush.msra.mxu0 %v64
    %101 = vmatpush.msra.mxu0 %v62
    %102 = vmatpush.msra.mxu0 %v60
    %103 = vmatpush.msra.mxu0 %v58
    %104 = vmatpush.msra.mxu0 %v56
    %105 = vmatpush.msra.mxu0 %v54
    %106 = vmatpush.msra.mxu0 %v52
    %107 = vmatpush.msra.mxu0 %v50
    %108 = vmatpush.msra.mxu0 %v48
    %109 = vmatpush.msra.mxu0 %v46
    %110 = vmatpush.msra.mxu0 %v44
    %111 = vmatmul.f32.gmra.mxu0 %v42
    %v112 = vpop.f32.mrf.mxu0
    %v113 = vadd.f32 0.0, %v112
    %114 = vdwg.mxu0
    %115 = vst [vmem:[#allocation7] sm:$0xff] %v93
    %116 = vst [vmem:[#allocation7 + $0x8] sm:$0xff] %v113
    // Predicated region
    $region18: #{tpu_custom_call.1} parent=1 // pred_check
      _
    $region19: #{tpu_custom_call.1} parent=1 // pred_check_branch
      %118 = sbr.rel (0) target = $region21
    $region20: #{tpu_custom_call.1} parent=1 // pred_region
      %120 = vsyncadd [#allocation4], 0
      %s122 = sshll.u32 [#allocation7], 4
      %s123 = int_to_ptr.vmem [resolvable:$true] %s122
      %s124 = sshll.u32 %s2, 4
      %s125 = int_to_ptr.hbm [resolvable:$true] %s124
      %127 = dma.vmem_to_hbm [thread:$0]  %s123, 256, %s125, [#allocation4]
    $region21: #{tpu_custom_call.1} parent=1 // pred_fallthru
      _
    // Predicated region
    $region22: #{tpu_custom_call.1} parent=1 // pred_check
      _
    $region23: #{tpu_custom_call.1} parent=1 // pred_check_branch
      %129 = sbr.rel (0) target = $region25
    $region24: #{tpu_custom_call.1} parent=1 // pred_region
      %131 = dma.done [#allocation4], 256
    $region25: #{tpu_custom_call.1} parent=1 // pred_fallthru
      _
    %132 = vsyncpa [#allocation3], 1
    %133 = vsyncpa [#allocation6], 1
    %134 = vsyncpa [#allocation4], 1

</llo_original>
